<compile_context>
chip_gen: v6e
topology: v6e:2x2x1
jax: 0.10.0
libtpu: 0.0.40
codegen_flags: <defaults>
</compile_context>

<pallas_src>
import functools
import math

import jax
import jax.numpy as jnp
from jax import lax
from jax.experimental import pallas as pl
from jax.experimental.pallas import tpu as pltpu

_PAIRS = ((0, 1), (0, 2), (0, 3), (1, 2), (1, 3), (2, 3))  # ri, rj, rk, ij, ik, jk


# ---------------------------------------------------------------------------
# Pass 1: per-batch raw-moment partial sums.
# ---------------------------------------------------------------------------
def _qbn_stats_kernel(x_ref, msum_ref, acc_ref, *, C, HW, n_tile, cw, need_mask):
    # x_ref:    [1, 4C, n_tile]  block of the NCHW-reshaped input for batch b
    # msum_ref: [1, C, 14]       per-batch raw-moment sums (written only at the
    #                            last HW tile of this batch)
    # acc_ref:  [14, C, cw] VMEM lane-wise partial-sum slabs (VALU adds only;
    #                            the XLU lane reduce happens once at finalize)
    t = pl.program_id(1)
    nt = pl.num_programs(1)

    @pl.when(t == 0)
    def _init():
        acc_ref[...] = jnp.zeros_like(acc_ref)

    # Static chunk walk: bounds vreg live ranges, no per-step XLU reductions,
    # no single-lane read-modify-writes.
    for s in range(0, n_tile, cw):
        xr = x_ref[0, 0 * C:1 * C, s:s + cw].astype(jnp.float32)
        xi = x_ref[0, 1 * C:2 * C, s:s + cw].astype(jnp.float32)
        xj = x_ref[0, 2 * C:3 * C, s:s + cw].astype(jnp.float32)
        xk = x_ref[0, 3 * C:4 * C, s:s + cw].astype(jnp.float32)
        if need_mask:
            # cdiv grid: the last tile runs past HW; select (not multiply) so
            # OOB garbage (possibly NaN/inf) can never reach the accumulators.
            lane = lax.broadcasted_iota(jnp.int32, (C, cw), 1)
            valid = HW - (t * n_tile + s)
            keep = lane < valid
            zero = jnp.zeros((C, cw), jnp.float32)
            xr = jnp.where(keep, xr, zero)
            xi = jnp.where(keep, xi, zero)
            xj = jnp.where(keep, xj, zero)
            xk = jnp.where(keep, xk, zero)
        planes = (xr, xi, xj, xk)
        for idx in range(4):                        # sum x
            acc_ref[idx] += planes[idx]
        for idx in range(4):                        # sum x^2
            acc_ref[4 + idx] += planes[idx] * planes[idx]
        for idx, (a, b2) in enumerate(_PAIRS):      # sum x*y
            acc_ref[8 + idx] += planes[a] * planes[b2]

    @pl.when(t == nt - 1)
    def _finalize():
        for idx in range(14):
            msum_ref[0, :, idx:idx + 1] = jnp.sum(acc_ref[idx], axis=-1,
                                                  keepdims=True)


# ---------------------------------------------------------------------------
# Pass 2: fused apply, out = M @ x + bias  (coefficients precomputed on host).
# ---------------------------------------------------------------------------
def _qbn_apply_kernel(coef_ref, x_ref, out_ref, *, C):
    # coef_ref: [C, 20] = [M row-major (16 cols) | bias (4 cols)], f32
    # x_ref / out_ref: [1, 4C, n_tile]
    coef = coef_ref[...]
    xr = x_ref[0, 0 * C:1 * C, :].astype(jnp.float32)
    xi = x_ref[0, 1 * C:2 * C, :].astype(jnp.float32)
    xj = x_ref[0, 2 * C:3 * C, :].astype(jnp.float32)
    xk = x_ref[0, 3 * C:4 * C, :].astype(jnp.float32)
    for a in range(4):
        m0 = coef[:, 4 * a + 0:4 * a + 1]
        m1 = coef[:, 4 * a + 1:4 * a + 2]
        m2 = coef[:, 4 * a + 2:4 * a + 3]
        m3 = coef[:, 4 * a + 3:4 * a + 4]
        bb = coef[:, 16 + a:17 + a]
        plane = m0 * xr + m1 * xi + m2 * xj + m3 * xk + bb
        out_ref[0, a * C:(a + 1) * C, :] = plane.astype(out_ref.dtype)


# ---------------------------------------------------------------------------
# Tile / budget helpers.
# ---------------------------------------------------------------------------
def _vmem_capacity_bytes():
    try:
        return int(pltpu.get_tpu_info().vmem_capacity_bytes)
    except Exception:
        return 64 * 1024 * 1024      # conservative (v7x per-TC size)


def _pick_tile(hw, c4, itemsize, budget_bytes, streams, max_tile=1 << 30):
    """Largest HW tile (multiple of 128) whose `streams` double-buffered
    [c4, n_tile] blocks fit `budget_bytes`.  Prefers an exact divisor of hw
    (no tail masking); otherwise the caller uses a cdiv grid + tail mask."""
    if hw <= 128:
        return hw                          # one full block (== full dim is legal)
    per_lane = max(streams * c4 * itemsize, 1)
    cap = (budget_bytes // per_lane) // 128 * 128
    cap = min(cap, (hw // 128) * 128, (max_tile // 128) * 128)
    cap = max(cap, 128)
    best = 0
    nt = 128
    while nt <= cap:
        if hw % nt == 0:
            best = nt
        nt += 128
    return best if best else cap


def _pick_chunk(n_tile):
    for cand in (512, 384, 256, 128):
        if n_tile % cand == 0:
            return cand
    return n_tile                          # hw < 128 case: single small chunk


# ---------------------------------------------------------------------------
# Wrapper.
# ---------------------------------------------------------------------------
def quaternion_batch_norm(x, gamma, beta, *, eps=1e-5):
    """Training-mode forward of QuaternionBatchNorm.

    Args:
      x:     [B, 4*C, H, W] (NCHW, same as the PyTorch module).
      gamma: [10, C], rows in order (rr, ri, rj, rk, ii, ij, ik, jj, jk, kk).
      beta:  [4*C].
    Returns:
      (out [B, 4*C, H, W], batch_mean [4*C], batch_var [4*C])
    """
    B, C4, H, W = x.shape
    C = C4 // 4
    HW = H * W
    N = B * HW
    itemsize = jnp.dtype(x.dtype).itemsize
    f32 = jnp.float32

    x3 = x.reshape(B, C4, HW)              # free view, no HBM transpose

    cap = _vmem_capacity_bytes()
    vmem_limit = int(min(cap * 3 // 4, 100 * 1024 * 1024))
    pass_budget = int(min(cap // 2, 48 * 1024 * 1024))

    # ---------------- pass 1: per-batch raw moments -------------------------
    acc_reserve = 14 * C * 512 * 4 + (2 << 20)     # stats accumulator scratch
    nt_s = _pick_tile(HW, C4, itemsize,
                      budget_bytes=max(pass_budget - acc_reserve, 2 << 20),
                      streams=2, max_tile=4096)    # input-only double buffering
    cw = _pick_chunk(nt_s)
    T_s = pl.cdiv(HW, nt_s)
    need_mask = (HW % nt_s) != 0

    x_spec_s = pl.BlockSpec((1, C4, nt_s), lambda b, t: (b, 0, t))
    msum = pl.pallas_call(
        functools.partial(_qbn_stats_kernel, C=C, HW=HW, n_tile=nt_s, cw=cw,
                          need_mask=need_mask),
        out_shape=jax.ShapeDtypeStruct((B, C, 14), f32),
        grid=(B, T_s),
        in_specs=[x_spec_s],
        out_specs=pl.BlockSpec((1, C, 14), lambda b, t: (b, 0, 0)),
        scratch_shapes=[pltpu.VMEM((14, C, cw), f32)],
        compiler_params=pltpu.CompilerParams(
            dimension_semantics=("parallel", "arbitrary"),
            vmem_limit_bytes=vmem_limit),
    )(x3)

    # ---------------- tiny O(C) combine + whitening fold (plain JAX) --------
    mom = jnp.sum(msum, axis=0) * (1.0 / N)        # [C, 14] raw moments
    mr, mi, mj, mk = mom[:, 0], mom[:, 1], mom[:, 2], mom[:, 3]
    var_r = mom[:, 4] - mr * mr
    var_i = mom[:, 5] - mi * mi
    var_j = mom[:, 6] - mj * mj
    var_k = mom[:, 7] - mk * mk
    cov_ri = mom[:, 8] - mr * mi
    cov_rj = mom[:, 9] - mr * mj
    cov_rk = mom[:, 10] - mr * mk
    cov_ij = mom[:, 11] - mi * mj
    cov_ik = mom[:, 12] - mi * mk
    cov_jk = mom[:, 13] - mj * mk

    # Cholesky-style whitening (mirrors the PyTorch module).  The tiny floor
    # only guards sqrt against f32 cancellation; it is a no-op for normal data.
    tiny = jnp.asarray(1e-12, f32)
    vr, vi, vj, vk = var_r + eps, var_i + eps, var_j + eps, var_k + eps
    w_rr = jnp.sqrt(vr)
    w_ri = cov_ri / w_rr
    w_ii = jnp.sqrt(jnp.maximum(vi - w_ri * w_ri, tiny))
    w_rj = cov_rj / w_rr
    w_ij = (cov_ij - w_ri * w_rj) / w_ii
    w_jj = jnp.sqrt(jnp.maximum(vj - (w_ij * w_ij + w_rj * w_rj), tiny))
    w_rk = cov_rk / w_rr
    w_ik = (cov_ik - w_ri * w_rk) / w_ii
    w_jk = (cov_jk - (w_ij * w_ik + w_rj * w_rk)) / w_jj
    w_kk = jnp.sqrt(jnp.maximum(vk - (w_jk * w_jk + w_ik * w_ik + w_rk * w_rk),
                                tiny))
    W_rows = ((w_rr, w_ri, w_rj, w_rk),
              (None, w_ii, w_ij, w_ik),
              (None, None, w_jj, w_jk),
              (None, None, None, w_kk))

    g = gamma.astype(f32)
    grr, gri, grj, grk, gii, gij, gik, gjj, gjk, gkk = [g[i] for i in range(10)]
    G = ((grr, gri, grj, grk),
         (gri, gii, gij, gik),
         (grj, gij, gjj, gjk),
         (grk, gik, gjk, gkk))

    # Fold: out = G @ (W @ (x - mean)) + beta  ==  M @ x + (beta - M @ mean)
    beta_f = beta.astype(f32).reshape(4, C)
    m_cols, bias_cols = [], []
    for a in range(4):
        row = []
        for q in range(4):
            m_aq = 0.0
            for b_idx in range(q + 1):          # W is upper triangular
                m_aq = m_aq + G[a][b_idx] * W_rows[b_idx][q]
            row.append(m_aq)
        m_cols.extend(row)
        bias_cols.append(beta_f[a]
                         - (row[0] * mr + row[1] * mi + row[2] * mj + row[3] * mk))
    coef = jnp.stack(m_cols + bias_cols, axis=1)          # [C, 20]

    batch_mean = jnp.concatenate([mr, mi, mj, mk])        # [4C], r|i|j|k order
    batch_var = jnp.concatenate([var_r, var_i, var_j, var_k])

    # ---------------- pass 2: fused apply ------------------------------------
    nt_a = _pick_tile(HW, C4, itemsize, budget_bytes=pass_budget,
                      streams=4)                # in + out double buffering
    T_a = pl.cdiv(HW, nt_a)
    x_spec_a = pl.BlockSpec((1, C4, nt_a), lambda b, t: (b, 0, t))
    out3 = pl.pallas_call(
        functools.partial(_qbn_apply_kernel, C=C),
        out_shape=jax.ShapeDtypeStruct((B, C4, HW), x.dtype),
        grid=(B, T_a),
        in_specs=[pl.BlockSpec((C, 20), lambda b, t: (0, 0)), x_spec_a],
        out_specs=x_spec_a,
        compiler_params=pltpu.CompilerParams(
            dimension_semantics=("parallel", "parallel"),
            vmem_limit_bytes=vmem_limit),
    )(coef, x3)

    out = out3.reshape(B, C4, H, W)
    return out, batch_mean, batch_var


# ---------------------------------------------------------------------------
# Pure-JAX mirror of the PyTorch training-mode forward (verification only).
# ---------------------------------------------------------------------------
def _reference_forward(x, gamma, beta, eps=1e-5):
    B, C4, H, W = x.shape
    C = C4 // 4
    xr, xi, xj, xk = x[:, :C], x[:, C:2 * C], x[:, 2 * C:3 * C], x[:, 3 * C:]
    red = (0, 2, 3)
    bshape = (1, C, 1, 1)

    def m(a):
        return a.mean(red)

    mr, mi, mj, mk = m(xr), m(xi), m(xj), m(xk)
    cr = xr - mr.reshape(bshape)
    ci = xi - mi.reshape(bshape)
    cj = xj - mj.reshape(bshape)
    ck = xk - mk.reshape(bshape)
    var_r, var_i, var_j, var_k = m(cr * cr), m(ci * ci), m(cj * cj), m(ck * ck)
    cov_ri, cov_rj, cov_rk = m(cr * ci), m(cr * cj), m(cr * ck)
    cov_ij, cov_ik, cov_jk = m(ci * cj), m(ci * ck), m(cj * ck)

    vre, vie, vje, vke = var_r + eps, var_i + eps, var_j + eps, var_k + eps
    w_rr = jnp.sqrt(vre)
    w_ri = cov_ri / w_rr
    w_ii = jnp.sqrt(vie - w_ri * w_ri)
    w_rj = cov_rj / w_rr
    w_ij = (cov_ij - w_ri * w_rj) / w_ii
    w_jj = jnp.sqrt(vje - (w_ij * w_ij + w_rj * w_rj))
    w_rk = cov_rk / w_rr
    w_ik = (cov_ik - w_ri * w_rk) / w_ii
    w_jk = (cov_jk - (w_ij * w_ik + w_rj * w_rk)) / w_jj
    w_kk = jnp.sqrt(vke - (w_jk * w_jk + w_ik * w_ik + w_rk * w_rk))

    def bc(a):
        return a.reshape(bshape)

    rn = bc(w_rr) * cr + bc(w_ri) * ci + bc(w_rj) * cj + bc(w_rk) * ck
    i_n = bc(w_ii) * ci + bc(w_ij) * cj + bc(w_ik) * ck
    j_n = bc(w_jj) * cj + bc(w_jk) * ck
    k_n = bc(w_kk) * ck

    grr, gri, grj, grk, gii, gij, gik, gjj, gjk, gkk = [bc(gamma[i]) for i in range(10)]
    r_out = grr * rn + gri * i_n + grj * j_n + grk * k_n
    i_out = gri * rn + gii * i_n + gij * j_n + gik * k_n
    j_out = grj * rn + gij * i_n + gjj * j_n + gjk * k_n
    k_out = grk * rn + gik * i_n + gjk * j_n + gkk * k_n
    out = jnp.concatenate([r_out, i_out, j_out, k_out], axis=1)
    out = out + beta.reshape(1, 4 * C, 1, 1)
    mean = jnp.concatenate([mr, mi, mj, mk])
    var = jnp.concatenate([var_r, var_i, var_j, var_k])
    return out, mean, var


if __name__ == "__main__":
    key = jax.random.PRNGKey(0)
    kx, kg, kb, kx2 = jax.random.split(key, 4)

    num_features = 4
    C4 = 4 * num_features
    eps, momentum = 1e-5, 0.1

    # Gamma: module init (1/sqrt(4) diag, 0 off-diag) plus a small deterministic
    # perturbation so the full 4x4 affine (cross terms) is exercised.
    base = jnp.zeros((10, num_features), jnp.float32)
    for d in (0, 4, 7, 9):                           # rr, ii, jj, kk rows
        base = base.at[d].set(1.0 / math.sqrt(4.0))
    gamma = base + 0.1 * jax.random.normal(kg, (10, num_features), dtype=jnp.float32)
    beta = 0.1 * jax.random.normal(kb, (C4,), dtype=jnp.float32)

    def check(x):
        out, bm, bv = quaternion_batch_norm(x, gamma, beta, eps=eps)
        out = jax.block_until_ready(out)
        ref_out, ref_m, ref_v = _reference_forward(x, gamma, beta, eps=eps)
        assert out.shape == x.shape
        assert jnp.max(jnp.abs(out - ref_out)) < 1e-4
        assert jnp.max(jnp.abs(bm - ref_m)) < 1e-5
        assert jnp.max(jnp.abs(bv - ref_v)) < 1e-5
        return bm, bv

    # Case 1: HW divisible by 128 (exact-divisor tiles, no tail masking).
    x1 = jax.random.normal(kx, (2, C4, 16, 16), dtype=jnp.float32)
    batch_mean, batch_var = check(x1)

    # Case 2: HW not divisible by 128 (cdiv grid + in-kernel tail masking).
    x2 = jax.random.normal(kx2, (2, C4, 16, 10), dtype=jnp.float32)
    check(x2)

    # Running-stats update (as the PyTorch module writes it) — plain JAX glue.
    running_mean = jnp.zeros((C4,), jnp.float32)
    running_var = jnp.ones((C4,), jnp.float32)
    running_mean = momentum * running_mean + (1.0 - momentum) * batch_mean
    running_var = momentum * running_var + (1.0 - momentum) * batch_var
    jax.block_until_ready((running_mean, running_var))

    print("KERNEL_OK")
</pallas_src>

<mosaic_0001>
module attributes {stable_mosaic.version = 11 : i64} {
  func.func @_qbn_stats_kernel(%arg0: i32, %arg1: i32, %arg2: memref<1x16x256xf32, #tpu.memory_space<vmem>>, %arg3: memref<1x4x14xf32, #tpu.memory_space<vmem>>, %arg4: memref<14x4x256xf32, #tpu.memory_space<vmem>>) attributes {dimension_semantics = [#tpu.dimension_semantics<parallel>, #tpu.dimension_semantics<arbitrary>], iteration_bounds = array<i64: 2, 1>, scalar_prefetch = 0 : i64, scratch_operands = 1 : i64, tpu.core_type = #tpu.core_type<tc>, window_params = [{transform_indices = @transform_0, window_bounds = array<i64: 1, 16, 256>}, {transform_indices = @transform_1, window_bounds = array<i64: 1, 4, 14>}]} {
    %c0_i32 = arith.constant 0 : i32
    %0 = arith.cmpi eq, %arg1, %c0_i32 : i32
    %1 = arith.extui %0 : i1 to i32
    %c0_i32_0 = arith.constant 0 : i32
    %2 = arith.cmpi ne, %1, %c0_i32_0 : i32
    scf.if %2 {
      %cst = arith.constant 0.000000e+00 : f32
      %108 = vector.broadcast %cst : f32 to vector<14x4x256xf32>
      %c0_85 = arith.constant 0 : index
      %c0_86 = arith.constant 0 : index
      %c0_87 = arith.constant 0 : index
      %109 = vector.load %arg4[%c0_85, %c0_86, %c0_87] : memref<14x4x256xf32, #tpu.memory_space<vmem>>, vector<14x4x256xf32>
      tpu.vector_store %arg4[%c0_85, %c0_86, %c0_87], %108 {strides = array<i32>} : memref<14x4x256xf32, #tpu.memory_space<vmem>>, vector<14x4x256xf32>,
    } else {
    }
    %c0 = arith.constant 0 : index
    %c0_1 = arith.constant 0 : index
    %c0_2 = arith.constant 0 : index
    %3 = vector.load %arg2[%c0, %c0_1, %c0_2] : memref<1x16x256xf32, #tpu.memory_space<vmem>>, vector<1x4x256xf32>
    %4 = vector.shape_cast %3 : vector<1x4x256xf32> to vector<4x256xf32>
    %c0_3 = arith.constant 0 : index
    %c4 = arith.constant 4 : index
    %c0_4 = arith.constant 0 : index
    %5 = vector.load %arg2[%c0_3, %c4, %c0_4] : memref<1x16x256xf32, #tpu.memory_space<vmem>>, vector<1x4x256xf32>
    %6 = vector.shape_cast %5 : vector<1x4x256xf32> to vector<4x256xf32>
    %c0_5 = arith.constant 0 : index
    %c8 = arith.constant 8 : index
    %c0_6 = arith.constant 0 : index
    %7 = vector.load %arg2[%c0_5, %c8, %c0_6] : memref<1x16x256xf32, #tpu.memory_space<vmem>>, vector<1x4x256xf32>
    %8 = vector.shape_cast %7 : vector<1x4x256xf32> to vector<4x256xf32>
    %c0_7 = arith.constant 0 : index
    %c12 = arith.constant 12 : index
    %c0_8 = arith.constant 0 : index
    %9 = vector.load %arg2[%c0_7, %c12, %c0_8] : memref<1x16x256xf32, #tpu.memory_space<vmem>>, vector<1x4x256xf32>
    %10 = vector.shape_cast %9 : vector<1x4x256xf32> to vector<4x256xf32>
    %c0_9 = arith.constant 0 : index
    %c0_10 = arith.constant 0 : index
    %c0_11 = arith.constant 0 : index
    %11 = vector.load %arg4[%c0_9, %c0_10, %c0_11] : memref<14x4x256xf32, #tpu.memory_space<vmem>>, vector<1x4x256xf32>
    %12 = vector.shape_cast %11 : vector<1x4x256xf32> to vector<4x256xf32>
    %13 = arith.addf %12, %4 : vector<4x256xf32>
    %c0_12 = arith.constant 0 : index
    %c0_13 = arith.constant 0 : index
    %c0_14 = arith.constant 0 : index
    %14 = vector.load %arg4[%c0_12, %c0_13, %c0_14] : memref<14x4x256xf32, #tpu.memory_space<vmem>>, vector<1x4x256xf32>
    %15 = vector.shape_cast %14 : vector<1x4x256xf32> to vector<4x256xf32>
    %16 = vector.shape_cast %13 : vector<4x256xf32> to vector<1x4x256xf32>
    tpu.vector_store %arg4[%c0_12, %c0_13, %c0_14], %16 {strides = array<i32>} : memref<14x4x256xf32, #tpu.memory_space<vmem>>, vector<1x4x256xf32>,
    %c1 = arith.constant 1 : index
    %c0_15 = arith.constant 0 : index
    %c0_16 = arith.constant 0 : index
    %17 = vector.load %arg4[%c1, %c0_15, %c0_16] : memref<14x4x256xf32, #tpu.memory_space<vmem>>, vector<1x4x256xf32>
    %18 = vector.shape_cast %17 : vector<1x4x256xf32> to vector<4x256xf32>
    %19 = arith.addf %18, %6 : vector<4x256xf32>
    %c1_17 = arith.constant 1 : index
    %c0_18 = arith.constant 0 : index
    %c0_19 = arith.constant 0 : index
    %20 = vector.load %arg4[%c1_17, %c0_18, %c0_19] : memref<14x4x256xf32, #tpu.memory_space<vmem>>, vector<1x4x256xf32>
    %21 = vector.shape_cast %20 : vector<1x4x256xf32> to vector<4x256xf32>
    %22 = vector.shape_cast %19 : vector<4x256xf32> to vector<1x4x256xf32>
    tpu.vector_store %arg4[%c1_17, %c0_18, %c0_19], %22 {strides = array<i32>} : memref<14x4x256xf32, #tpu.memory_space<vmem>>, vector<1x4x256xf32>,
    %c2 = arith.constant 2 : index
    %c0_20 = arith.constant 0 : index
    %c0_21 = arith.constant 0 : index
    %23 = vector.load %arg4[%c2, %c0_20, %c0_21] : memref<14x4x256xf32, #tpu.memory_space<vmem>>, vector<1x4x256xf32>
    %24 = vector.shape_cast %23 : vector<1x4x256xf32> to vector<4x256xf32>
    %25 = arith.addf %24, %8 : vector<4x256xf32>
    %c2_22 = arith.constant 2 : index
    %c0_23 = arith.constant 0 : index
    %c0_24 = arith.constant 0 : index
    %26 = vector.load %arg4[%c2_22, %c0_23, %c0_24] : memref<14x4x256xf32, #tpu.memory_space<vmem>>, vector<1x4x256xf32>
    %27 = vector.shape_cast %26 : vector<1x4x256xf32> to vector<4x256xf32>
    %28 = vector.shape_cast %25 : vector<4x256xf32> to vector<1x4x256xf32>
    tpu.vector_store %arg4[%c2_22, %c0_23, %c0_24], %28 {strides = array<i32>} : memref<14x4x256xf32, #tpu.memory_space<vmem>>, vector<1x4x256xf32>,
    %c3 = arith.constant 3 : index
    %c0_25 = arith.constant 0 : index
    %c0_26 = arith.constant 0 : index
    %29 = vector.load %arg4[%c3, %c0_25, %c0_26] : memref<14x4x256xf32, #tpu.memory_space<vmem>>, vector<1x4x256xf32>
    %30 = vector.shape_cast %29 : vector<1x4x256xf32> to vector<4x256xf32>
    %31 = arith.addf %30, %10 : vector<4x256xf32>
    %c3_27 = arith.constant 3 : index
    %c0_28 = arith.constant 0 : index
    %c0_29 = arith.constant 0 : index
    %32 = vector.load %arg4[%c3_27, %c0_28, %c0_29] : memref<14x4x256xf32, #tpu.memory_space<vmem>>, vector<1x4x256xf32>
    %33 = vector.shape_cast %32 : vector<1x4x256xf32> to vector<4x256xf32>
    %34 = vector.shape_cast %31 : vector<4x256xf32> to vector<1x4x256xf32>
    tpu.vector_store %arg4[%c3_27, %c0_28, %c0_29], %34 {strides = array<i32>} : memref<14x4x256xf32, #tpu.memory_space<vmem>>, vector<1x4x256xf32>,
    %c4_30 = arith.constant 4 : index
    %c0_31 = arith.constant 0 : index
    %c0_32 = arith.constant 0 : index
    %35 = vector.load %arg4[%c4_30, %c0_31, %c0_32] : memref<14x4x256xf32, #tpu.memory_space<vmem>>, vector<1x4x256xf32>
    %36 = vector.shape_cast %35 : vector<1x4x256xf32> to vector<4x256xf32>
    %37 = arith.mulf %4, %4 : vector<4x256xf32>
    %38 = arith.addf %36, %37 : vector<4x256xf32>
    %c4_33 = arith.constant 4 : index
    %c0_34 = arith.constant 0 : index
    %c0_35 = arith.constant 0 : index
    %39 = vector.load %arg4[%c4_33, %c0_34, %c0_35] : memref<14x4x256xf32, #tpu.memory_space<vmem>>, vector<1x4x256xf32>
    %40 = vector.shape_cast %39 : vector<1x4x256xf32> to vector<4x256xf32>
    %41 = vector.shape_cast %38 : vector<4x256xf32> to vector<1x4x256xf32>
    tpu.vector_store %arg4[%c4_33, %c0_34, %c0_35], %41 {strides = array<i32>} : memref<14x4x256xf32, #tpu.memory_space<vmem>>, vector<1x4x256xf32>,
    %c5 = arith.constant 5 : index
    %c0_36 = arith.constant 0 : index
    %c0_37 = arith.constant 0 : index
    %42 = vector.load %arg4[%c5, %c0_36, %c0_37] : memref<14x4x256xf32, #tpu.memory_space<vmem>>, vector<1x4x256xf32>
    %43 = vector.shape_cast %42 : vector<1x4x256xf32> to vector<4x256xf32>
    %44 = arith.mulf %6, %6 : vector<4x256xf32>
    %45 = arith.addf %43, %44 : vector<4x256xf32>
    %c5_38 = arith.constant 5 : index
    %c0_39 = arith.constant 0 : index
    %c0_40 = arith.constant 0 : index
    %46 = vector.load %arg4[%c5_38, %c0_39, %c0_40] : memref<14x4x256xf32, #tpu.memory_space<vmem>>, vector<1x4x256xf32>
    %47 = vector.shape_cast %46 : vector<1x4x256xf32> to vector<4x256xf32>
    %48 = vector.shape_cast %45 : vector<4x256xf32> to vector<1x4x256xf32>
    tpu.vector_store %arg4[%c5_38, %c0_39, %c0_40], %48 {strides = array<i32>} : memref<14x4x256xf32, #tpu.memory_space<vmem>>, vector<1x4x256xf32>,
    %c6 = arith.constant 6 : index
    %c0_41 = arith.constant 0 : index
    %c0_42 = arith.constant 0 : index
    %49 = vector.load %arg4[%c6, %c0_41, %c0_42] : memref<14x4x256xf32, #tpu.memory_space<vmem>>, vector<1x4x256xf32>
    %50 = vector.shape_cast %49 : vector<1x4x256xf32> to vector<4x256xf32>
    %51 = arith.mulf %8, %8 : vector<4x256xf32>
    %52 = arith.addf %50, %51 : vector<4x256xf32>
    %c6_43 = arith.constant 6 : index
    %c0_44 = arith.constant 0 : index
    %c0_45 = arith.constant 0 : index
    %53 = vector.load %arg4[%c6_43, %c0_44, %c0_45] : memref<14x4x256xf32, #tpu.memory_space<vmem>>, vector<1x4x256xf32>
    %54 = vector.shape_cast %53 : vector<1x4x256xf32> to vector<4x256xf32>
    %55 = vector.shape_cast %52 : vector<4x256xf32> to vector<1x4x256xf32>
    tpu.vector_store %arg4[%c6_43, %c0_44, %c0_45], %55 {strides = array<i32>} : memref<14x4x256xf32, #tpu.memory_space<vmem>>, vector<1x4x256xf32>,
    %c7 = arith.constant 7 : index
    %c0_46 = arith.constant 0 : index
    %c0_47 = arith.constant 0 : index
    %56 = vector.load %arg4[%c7, %c0_46, %c0_47] : memref<14x4x256xf32, #tpu.memory_space<vmem>>, vector<1x4x256xf32>
    %57 = vector.shape_cast %56 : vector<1x4x256xf32> to vector<4x256xf32>
    %58 = arith.mulf %10, %10 : vector<4x256xf32>
    %59 = arith.addf %57, %58 : vector<4x256xf32>
    %c7_48 = arith.constant 7 : index
    %c0_49 = arith.constant 0 : index
    %c0_50 = arith.constant 0 : index
    %60 = vector.load %arg4[%c7_48, %c0_49, %c0_50] : memref<14x4x256xf32, #tpu.memory_space<vmem>>, vector<1x4x256xf32>
    %61 = vector.shape_cast %60 : vector<1x4x256xf32> to vector<4x256xf32>
    %62 = vector.shape_cast %59 : vector<4x256xf32> to vector<1x4x256xf32>
    tpu.vector_store %arg4[%c7_48, %c0_49, %c0_50], %62 {strides = array<i32>} : memref<14x4x256xf32, #tpu.memory_space<vmem>>, vector<1x4x256xf32>,
    %c8_51 = arith.constant 8 : index
    %c0_52 = arith.constant 0 : index
    %c0_53 = arith.constant 0 : index
    %63 = vector.load %arg4[%c8_51, %c0_52, %c0_53] : memref<14x4x256xf32, #tpu.memory_space<vmem>>, vector<1x4x256xf32>
    %64 = vector.shape_cast %63 : vector<1x4x256xf32> to vector<4x256xf32>
    %65 = arith.mulf %4, %6 : vector<4x256xf32>
    %66 = arith.addf %64, %65 : vector<4x256xf32>
    %c8_54 = arith.constant 8 : index
    %c0_55 = arith.constant 0 : index
    %c0_56 = arith.constant 0 : index
    %67 = vector.load %arg4[%c8_54, %c0_55, %c0_56] : memref<14x4x256xf32, #tpu.memory_space<vmem>>, vector<1x4x256xf32>
    %68 = vector.shape_cast %67 : vector<1x4x256xf32> to vector<4x256xf32>
    %69 = vector.shape_cast %66 : vector<4x256xf32> to vector<1x4x256xf32>
    tpu.vector_store %arg4[%c8_54, %c0_55, %c0_56], %69 {strides = array<i32>} : memref<14x4x256xf32, #tpu.memory_space<vmem>>, vector<1x4x256xf32>,
    %c9 = arith.constant 9 : index
    %c0_57 = arith.constant 0 : index
    %c0_58 = arith.constant 0 : index
    %70 = vector.load %arg4[%c9, %c0_57, %c0_58] : memref<14x4x256xf32, #tpu.memory_space<vmem>>, vector<1x4x256xf32>
    %71 = vector.shape_cast %70 : vector<1x4x256xf32> to vector<4x256xf32>
    %72 = arith.mulf %4, %8 : vector<4x256xf32>
    %73 = arith.addf %71, %72 : vector<4x256xf32>
    %c9_59 = arith.constant 9 : index
    %c0_60 = arith.constant 0 : index
    %c0_61 = arith.constant 0 : index
    %74 = vector.load %arg4[%c9_59, %c0_60, %c0_61] : memref<14x4x256xf32, #tpu.memory_space<vmem>>, vector<1x4x256xf32>
    %75 = vector.shape_cast %74 : vector<1x4x256xf32> to vector<4x256xf32>
    %76 = vector.shape_cast %73 : vector<4x256xf32> to vector<1x4x256xf32>
    tpu.vector_store %arg4[%c9_59, %c0_60, %c0_61], %76 {strides = array<i32>} : memref<14x4x256xf32, #tpu.memory_space<vmem>>, vector<1x4x256xf32>,
    %c10 = arith.constant 10 : index
    %c0_62 = arith.constant 0 : index
    %c0_63 = arith.constant 0 : index
    %77 = vector.load %arg4[%c10, %c0_62, %c0_63] : memref<14x4x256xf32, #tpu.memory_space<vmem>>, vector<1x4x256xf32>
    %78 = vector.shape_cast %77 : vector<1x4x256xf32> to vector<4x256xf32>
    %79 = arith.mulf %4, %10 : vector<4x256xf32>
    %80 = arith.addf %78, %79 : vector<4x256xf32>
    %c10_64 = arith.constant 10 : index
    %c0_65 = arith.constant 0 : index
    %c0_66 = arith.constant 0 : index
    %81 = vector.load %arg4[%c10_64, %c0_65, %c0_66] : memref<14x4x256xf32, #tpu.memory_space<vmem>>, vector<1x4x256xf32>
    %82 = vector.shape_cast %81 : vector<1x4x256xf32> to vector<4x256xf32>
    %83 = vector.shape_cast %80 : vector<4x256xf32> to vector<1x4x256xf32>
    tpu.vector_store %arg4[%c10_64, %c0_65, %c0_66], %83 {strides = array<i32>} : memref<14x4x256xf32, #tpu.memory_space<vmem>>, vector<1x4x256xf32>,
    %c11 = arith.constant 11 : index
    %c0_67 = arith.constant 0 : index
    %c0_68 = arith.constant 0 : index
    %84 = vector.load %arg4[%c11, %c0_67, %c0_68] : memref<14x4x256xf32, #tpu.memory_space<vmem>>, vector<1x4x256xf32>
    %85 = vector.shape_cast %84 : vector<1x4x256xf32> to vector<4x256xf32>
    %86 = arith.mulf %6, %8 : vector<4x256xf32>
    %87 = arith.addf %85, %86 : vector<4x256xf32>
    %c11_69 = arith.constant 11 : index
    %c0_70 = arith.constant 0 : index
    %c0_71 = arith.constant 0 : index
    %88 = vector.load %arg4[%c11_69, %c0_70, %c0_71] : memref<14x4x256xf32, #tpu.memory_space<vmem>>, vector<1x4x256xf32>
    %89 = vector.shape_cast %88 : vector<1x4x256xf32> to vector<4x256xf32>
    %90 = vector.shape_cast %87 : vector<4x256xf32> to vector<1x4x256xf32>
    tpu.vector_store %arg4[%c11_69, %c0_70, %c0_71], %90 {strides = array<i32>} : memref<14x4x256xf32, #tpu.memory_space<vmem>>, vector<1x4x256xf32>,
    %c12_72 = arith.constant 12 : index
    %c0_73 = arith.constant 0 : index
    %c0_74 = arith.constant 0 : index
    %91 = vector.load %arg4[%c12_72, %c0_73, %c0_74] : memref<14x4x256xf32, #tpu.memory_space<vmem>>, vector<1x4x256xf32>
    %92 = vector.shape_cast %91 : vector<1x4x256xf32> to vector<4x256xf32>
    %93 = arith.mulf %6, %10 : vector<4x256xf32>
    %94 = arith.addf %92, %93 : vector<4x256xf32>
    %c12_75 = arith.constant 12 : index
    %c0_76 = arith.constant 0 : index
    %c0_77 = arith.constant 0 : index
    %95 = vector.load %arg4[%c12_75, %c0_76, %c0_77] : memref<14x4x256xf32, #tpu.memory_space<vmem>>, vector<1x4x256xf32>
    %96 = vector.shape_cast %95 : vector<1x4x256xf32> to vector<4x256xf32>
    %97 = vector.shape_cast %94 : vector<4x256xf32> to vector<1x4x256xf32>
    tpu.vector_store %arg4[%c12_75, %c0_76, %c0_77], %97 {strides = array<i32>} : memref<14x4x256xf32, #tpu.memory_space<vmem>>, vector<1x4x256xf32>,
    %c13 = arith.constant 13 : index
    %c0_78 = arith.constant 0 : index
    %c0_79 = arith.constant 0 : index
    %98 = vector.load %arg4[%c13, %c0_78, %c0_79] : memref<14x4x256xf32, #tpu.memory_space<vmem>>, vector<1x4x256xf32>
    %99 = vector.shape_cast %98 : vector<1x4x256xf32> to vector<4x256xf32>
    %100 = arith.mulf %8, %10 : vector<4x256xf32>
    %101 = arith.addf %99, %100 : vector<4x256xf32>
    %c13_80 = arith.constant 13 : index
    %c0_81 = arith.constant 0 : index
    %c0_82 = arith.constant 0 : index
    %102 = vector.load %arg4[%c13_80, %c0_81, %c0_82] : memref<14x4x256xf32, #tpu.memory_space<vmem>>, vector<1x4x256xf32>
    %103 = vector.shape_cast %102 : vector<1x4x256xf32> to vector<4x256xf32>
    %104 = vector.shape_cast %101 : vector<4x256xf32> to vector<1x4x256xf32>
    tpu.vector_store %arg4[%c13_80, %c0_81, %c0_82], %104 {strides = array<i32>} : memref<14x4x256xf32, #tpu.memory_space<vmem>>, vector<1x4x256xf32>,
    %c0_i32_83 = arith.constant 0 : i32
    %105 = arith.cmpi eq, %arg1, %c0_i32_83 : i32
    %106 = arith.extui %105 : i1 to i32
    %c0_i32_84 = arith.constant 0 : i32
    %107 = arith.cmpi ne, %106, %c0_i32_84 : i32
    scf.if %107 {
      %c0_85 = arith.constant 0 : index
      %c0_86 = arith.constant 0 : index
      %c0_87 = arith.constant 0 : index
      %108 = vector.load %arg4[%c0_85, %c0_86, %c0_87] : memref<14x4x256xf32, #tpu.memory_space<vmem>>, vector<1x4x256xf32>
      %109 = vector.shape_cast %108 : vector<1x4x256xf32> to vector<4x256xf32>
      %cst = arith.constant dense<0.000000e+00> : vector<4xf32>
      %110 = vector.multi_reduction <add>, %109, %cst [1] : vector<4x256xf32> to vector<4xf32>
      %111 = vector.shape_cast %110 : vector<4xf32> to vector<4x1xf32>
      %c0_88 = arith.constant 0 : index
      %c0_89 = arith.constant 0 : index
      %c0_90 = arith.constant 0 : index
      %112 = vector.load %arg3[%c0_88, %c0_89, %c0_90] : memref<1x4x14xf32, #tpu.memory_space<vmem>>, vector<1x4x1xf32>
      %113 = vector.shape_cast %112 : vector<1x4x1xf32> to vector<4x1xf32>
      %114 = vector.shape_cast %111 : vector<4x1xf32> to vector<1x4x1xf32>
      tpu.vector_store %arg3[%c0_88, %c0_89, %c0_90], %114 {strides = array<i32>} : memref<1x4x14xf32, #tpu.memory_space<vmem>>, vector<1x4x1xf32>,
      %c1_91 = arith.constant 1 : index
      %c0_92 = arith.constant 0 : index
      %c0_93 = arith.constant 0 : index
      %115 = vector.load %arg4[%c1_91, %c0_92, %c0_93] : memref<14x4x256xf32, #tpu.memory_space<vmem>>, vector<1x4x256xf32>
      %116 = vector.shape_cast %115 : vector<1x4x256xf32> to vector<4x256xf32>
      %cst_94 = arith.constant dense<0.000000e+00> : vector<4xf32>
      %117 = vector.multi_reduction <add>, %116, %cst_94 [1] : vector<4x256xf32> to vector<4xf32>
      %118 = vector.shape_cast %117 : vector<4xf32> to vector<4x1xf32>
      %c0_95 = arith.constant 0 : index
      %c0_96 = arith.constant 0 : index
      %c1_97 = arith.constant 1 : index
      %119 = vector.load %arg3[%c0_95, %c0_96, %c1_97] : memref<1x4x14xf32, #tpu.memory_space<vmem>>, vector<1x4x1xf32>
      %120 = vector.shape_cast %119 : vector<1x4x1xf32> to vector<4x1xf32>
      %121 = vector.shape_cast %118 : vector<4x1xf32> to vector<1x4x1xf32>
      tpu.vector_store %arg3[%c0_95, %c0_96, %c1_97], %121 {strides = array<i32>} : memref<1x4x14xf32, #tpu.memory_space<vmem>>, vector<1x4x1xf32>,
      %c2_98 = arith.constant 2 : index
      %c0_99 = arith.constant 0 : index
      %c0_100 = arith.constant 0 : index
      %122 = vector.load %arg4[%c2_98, %c0_99, %c0_100] : memref<14x4x256xf32, #tpu.memory_space<vmem>>, vector<1x4x256xf32>
      %123 = vector.shape_cast %122 : vector<1x4x256xf32> to vector<4x256xf32>
      %cst_101 = arith.constant dense<0.000000e+00> : vector<4xf32>
      %124 = vector.multi_reduction <add>, %123, %cst_101 [1] : vector<4x256xf32> to vector<4xf32>
      %125 = vector.shape_cast %124 : vector<4xf32> to vector<4x1xf32>
      %c0_102 = arith.constant 0 : index
      %c0_103 = arith.constant 0 : index
      %c2_104 = arith.constant 2 : index
      %126 = vector.load %arg3[%c0_102, %c0_103, %c2_104] : memref<1x4x14xf32, #tpu.memory_space<vmem>>, vector<1x4x1xf32>
      %127 = vector.shape_cast %126 : vector<1x4x1xf32> to vector<4x1xf32>
      %128 = vector.shape_cast %125 : vector<4x1xf32> to vector<1x4x1xf32>
      tpu.vector_store %arg3[%c0_102, %c0_103, %c2_104], %128 {strides = array<i32>} : memref<1x4x14xf32, #tpu.memory_space<vmem>>, vector<1x4x1xf32>,
      %c3_105 = arith.constant 3 : index
      %c0_106 = arith.constant 0 : index
      %c0_107 = arith.constant 0 : index
      %129 = vector.load %arg4[%c3_105, %c0_106, %c0_107] : memref<14x4x256xf32, #tpu.memory_space<vmem>>, vector<1x4x256xf32>
      %130 = vector.shape_cast %129 : vector<1x4x256xf32> to vector<4x256xf32>
      %cst_108 = arith.constant dense<0.000000e+00> : vector<4xf32>
      %131 = vector.multi_reduction <add>, %130, %cst_108 [1] : vector<4x256xf32> to vector<4xf32>
      %132 = vector.shape_cast %131 : vector<4xf32> to vector<4x1xf32>
      %c0_109 = arith.constant 0 : index
      %c0_110 = arith.constant 0 : index
      %c3_111 = arith.constant 3 : index
      %133 = vector.load %arg3[%c0_109, %c0_110, %c3_111] : memref<1x4x14xf32, #tpu.memory_space<vmem>>, vector<1x4x1xf32>
      %134 = vector.shape_cast %133 : vector<1x4x1xf32> to vector<4x1xf32>
      %135 = vector.shape_cast %132 : vector<4x1xf32> to vector<1x4x1xf32>
      tpu.vector_store %arg3[%c0_109, %c0_110, %c3_111], %135 {strides = array<i32>} : memref<1x4x14xf32, #tpu.memory_space<vmem>>, vector<1x4x1xf32>,
      %c4_112 = arith.constant 4 : index
      %c0_113 = arith.constant 0 : index
      %c0_114 = arith.constant 0 : index
      %136 = vector.load %arg4[%c4_112, %c0_113, %c0_114] : memref<14x4x256xf32, #tpu.memory_space<vmem>>, vector<1x4x256xf32>
      %137 = vector.shape_cast %136 : vector<1x4x256xf32> to vector<4x256xf32>
      %cst_115 = arith.constant dense<0.000000e+00> : vector<4xf32>
      %138 = vector.multi_reduction <add>, %137, %cst_115 [1] : vector<4x256xf32> to vector<4xf32>
      %139 = vector.shape_cast %138 : vector<4xf32> to vector<4x1xf32>
      %c0_116 = arith.constant 0 : index
      %c0_117 = arith.constant 0 : index
      %c4_118 = arith.constant 4 : index
      %140 = vector.load %arg3[%c0_116, %c0_117, %c4_118] : memref<1x4x14xf32, #tpu.memory_space<vmem>>, vector<1x4x1xf32>
      %141 = vector.shape_cast %140 : vector<1x4x1xf32> to vector<4x1xf32>
      %142 = vector.shape_cast %139 : vector<4x1xf32> to vector<1x4x1xf32>
      tpu.vector_store %arg3[%c0_116, %c0_117, %c4_118], %142 {strides = array<i32>} : memref<1x4x14xf32, #tpu.memory_space<vmem>>, vector<1x4x1xf32>,
      %c5_119 = arith.constant 5 : index
      %c0_120 = arith.constant 0 : index
      %c0_121 = arith.constant 0 : index
      %143 = vector.load %arg4[%c5_119, %c0_120, %c0_121] : memref<14x4x256xf32, #tpu.memory_space<vmem>>, vector<1x4x256xf32>
      %144 = vector.shape_cast %143 : vector<1x4x256xf32> to vector<4x256xf32>
      %cst_122 = arith.constant dense<0.000000e+00> : vector<4xf32>
      %145 = vector.multi_reduction <add>, %144, %cst_122 [1] : vector<4x256xf32> to vector<4xf32>
      %146 = vector.shape_cast %145 : vector<4xf32> to vector<4x1xf32>
      %c0_123 = arith.constant 0 : index
      %c0_124 = arith.constant 0 : index
      %c5_125 = arith.constant 5 : index
      %147 = vector.load %arg3[%c0_123, %c0_124, %c5_125] : memref<1x4x14xf32, #tpu.memory_space<vmem>>, vector<1x4x1xf32>
      %148 = vector.shape_cast %147 : vector<1x4x1xf32> to vector<4x1xf32>
      %149 = vector.shape_cast %146 : vector<4x1xf32> to vector<1x4x1xf32>
      tpu.vector_store %arg3[%c0_123, %c0_124, %c5_125], %149 {strides = array<i32>} : memref<1x4x14xf32, #tpu.memory_space<vmem>>, vector<1x4x1xf32>,
      %c6_126 = arith.constant 6 : index
      %c0_127 = arith.constant 0 : index
      %c0_128 = arith.constant 0 : index
      %150 = vector.load %arg4[%c6_126, %c0_127, %c0_128] : memref<14x4x256xf32, #tpu.memory_space<vmem>>, vector<1x4x256xf32>
      %151 = vector.shape_cast %150 : vector<1x4x256xf32> to vector<4x256xf32>
      %cst_129 = arith.constant dense<0.000000e+00> : vector<4xf32>
      %152 = vector.multi_reduction <add>, %151, %cst_129 [1] : vector<4x256xf32> to vector<4xf32>
      %153 = vector.shape_cast %152 : vector<4xf32> to vector<4x1xf32>
      %c0_130 = arith.constant 0 : index
      %c0_131 = arith.constant 0 : index
      %c6_132 = arith.constant 6 : index
      %154 = vector.load %arg3[%c0_130, %c0_131, %c6_132] : memref<1x4x14xf32, #tpu.memory_space<vmem>>, vector<1x4x1xf32>
      %155 = vector.shape_cast %154 : vector<1x4x1xf32> to vector<4x1xf32>
      %156 = vector.shape_cast %153 : vector<4x1xf32> to vector<1x4x1xf32>
      tpu.vector_store %arg3[%c0_130, %c0_131, %c6_132], %156 {strides = array<i32>} : memref<1x4x14xf32, #tpu.memory_space<vmem>>, vector<1x4x1xf32>,
      %c7_133 = arith.constant 7 : index
      %c0_134 = arith.constant 0 : index
      %c0_135 = arith.constant 0 : index
      %157 = vector.load %arg4[%c7_133, %c0_134, %c0_135] : memref<14x4x256xf32, #tpu.memory_space<vmem>>, vector<1x4x256xf32>
      %158 = vector.shape_cast %157 : vector<1x4x256xf32> to vector<4x256xf32>
      %cst_136 = arith.constant dense<0.000000e+00> : vector<4xf32>
      %159 = vector.multi_reduction <add>, %158, %cst_136 [1] : vector<4x256xf32> to vector<4xf32>
      %160 = vector.shape_cast %159 : vector<4xf32> to vector<4x1xf32>
      %c0_137 = arith.constant 0 : index
      %c0_138 = arith.constant 0 : index
      %c7_139 = arith.constant 7 : index
      %161 = vector.load %arg3[%c0_137, %c0_138, %c7_139] : memref<1x4x14xf32, #tpu.memory_space<vmem>>, vector<1x4x1xf32>
      %162 = vector.shape_cast %161 : vector<1x4x1xf32> to vector<4x1xf32>
      %163 = vector.shape_cast %160 : vector<4x1xf32> to vector<1x4x1xf32>
      tpu.vector_store %arg3[%c0_137, %c0_138, %c7_139], %163 {strides = array<i32>} : memref<1x4x14xf32, #tpu.memory_space<vmem>>, vector<1x4x1xf32>,
      %c8_140 = arith.constant 8 : index
      %c0_141 = arith.constant 0 : index
      %c0_142 = arith.constant 0 : index
      %164 = vector.load %arg4[%c8_140, %c0_141, %c0_142] : memref<14x4x256xf32, #tpu.memory_space<vmem>>, vector<1x4x256xf32>
      %165 = vector.shape_cast %164 : vector<1x4x256xf32> to vector<4x256xf32>
      %cst_143 = arith.constant dense<0.000000e+00> : vector<4xf32>
      %166 = vector.multi_reduction <add>, %165, %cst_143 [1] : vector<4x256xf32> to vector<4xf32>
      %167 = vector.shape_cast %166 : vector<4xf32> to vector<4x1xf32>
      %c0_144 = arith.constant 0 : index
      %c0_145 = arith.constant 0 : index
      %c8_146 = arith.constant 8 : index
      %168 = vector.load %arg3[%c0_144, %c0_145, %c8_146] : memref<1x4x14xf32, #tpu.memory_space<vmem>>, vector<1x4x1xf32>
      %169 = vector.shape_cast %168 : vector<1x4x1xf32> to vector<4x1xf32>
      %170 = vector.shape_cast %167 : vector<4x1xf32> to vector<1x4x1xf32>
      tpu.vector_store %arg3[%c0_144, %c0_145, %c8_146], %170 {strides = array<i32>} : memref<1x4x14xf32, #tpu.memory_space<vmem>>, vector<1x4x1xf32>,
      %c9_147 = arith.constant 9 : index
      %c0_148 = arith.constant 0 : index
      %c0_149 = arith.constant 0 : index
      %171 = vector.load %arg4[%c9_147, %c0_148, %c0_149] : memref<14x4x256xf32, #tpu.memory_space<vmem>>, vector<1x4x256xf32>
      %172 = vector.shape_cast %171 : vector<1x4x256xf32> to vector<4x256xf32>
      %cst_150 = arith.constant dense<0.000000e+00> : vector<4xf32>
      %173 = vector.multi_reduction <add>, %172, %cst_150 [1] : vector<4x256xf32> to vector<4xf32>
      %174 = vector.shape_cast %173 : vector<4xf32> to vector<4x1xf32>
      %c0_151 = arith.constant 0 : index
      %c0_152 = arith.constant 0 : index
      %c9_153 = arith.constant 9 : index
      %175 = vector.load %arg3[%c0_151, %c0_152, %c9_153] : memref<1x4x14xf32, #tpu.memory_space<vmem>>, vector<1x4x1xf32>
      %176 = vector.shape_cast %175 : vector<1x4x1xf32> to vector<4x1xf32>
      %177 = vector.shape_cast %174 : vector<4x1xf32> to vector<1x4x1xf32>
      tpu.vector_store %arg3[%c0_151, %c0_152, %c9_153], %177 {strides = array<i32>} : memref<1x4x14xf32, #tpu.memory_space<vmem>>, vector<1x4x1xf32>,
      %c10_154 = arith.constant 10 : index
      %c0_155 = arith.constant 0 : index
      %c0_156 = arith.constant 0 : index
      %178 = vector.load %arg4[%c10_154, %c0_155, %c0_156] : memref<14x4x256xf32, #tpu.memory_space<vmem>>, vector<1x4x256xf32>
      %179 = vector.shape_cast %178 : vector<1x4x256xf32> to vector<4x256xf32>
      %cst_157 = arith.constant dense<0.000000e+00> : vector<4xf32>
      %180 = vector.multi_reduction <add>, %179, %cst_157 [1] : vector<4x256xf32> to vector<4xf32>
      %181 = vector.shape_cast %180 : vector<4xf32> to vector<4x1xf32>
      %c0_158 = arith.constant 0 : index
      %c0_159 = arith.constant 0 : index
      %c10_160 = arith.constant 10 : index
      %182 = vector.load %arg3[%c0_158, %c0_159, %c10_160] : memref<1x4x14xf32, #tpu.memory_space<vmem>>, vector<1x4x1xf32>
      %183 = vector.shape_cast %182 : vector<1x4x1xf32> to vector<4x1xf32>
      %184 = vector.shape_cast %181 : vector<4x1xf32> to vector<1x4x1xf32>
      tpu.vector_store %arg3[%c0_158, %c0_159, %c10_160], %184 {strides = array<i32>} : memref<1x4x14xf32, #tpu.memory_space<vmem>>, vector<1x4x1xf32>,
      %c11_161 = arith.constant 11 : index
      %c0_162 = arith.constant 0 : index
      %c0_163 = arith.constant 0 : index
      %185 = vector.load %arg4[%c11_161, %c0_162, %c0_163] : memref<14x4x256xf32, #tpu.memory_space<vmem>>, vector<1x4x256xf32>
      %186 = vector.shape_cast %185 : vector<1x4x256xf32> to vector<4x256xf32>
      %cst_164 = arith.constant dense<0.000000e+00> : vector<4xf32>
      %187 = vector.multi_reduction <add>, %186, %cst_164 [1] : vector<4x256xf32> to vector<4xf32>
      %188 = vector.shape_cast %187 : vector<4xf32> to vector<4x1xf32>
      %c0_165 = arith.constant 0 : index
      %c0_166 = arith.constant 0 : index
      %c11_167 = arith.constant 11 : index
      %189 = vector.load %arg3[%c0_165, %c0_166, %c11_167] : memref<1x4x14xf32, #tpu.memory_space<vmem>>, vector<1x4x1xf32>
      %190 = vector.shape_cast %189 : vector<1x4x1xf32> to vector<4x1xf32>
      %191 = vector.shape_cast %188 : vector<4x1xf32> to vector<1x4x1xf32>
      tpu.vector_store %arg3[%c0_165, %c0_166, %c11_167], %191 {strides = array<i32>} : memref<1x4x14xf32, #tpu.memory_space<vmem>>, vector<1x4x1xf32>,
      %c12_168 = arith.constant 12 : index
      %c0_169 = arith.constant 0 : index
      %c0_170 = arith.constant 0 : index
      %192 = vector.load %arg4[%c12_168, %c0_169, %c0_170] : memref<14x4x256xf32, #tpu.memory_space<vmem>>, vector<1x4x256xf32>
      %193 = vector.shape_cast %192 : vector<1x4x256xf32> to vector<4x256xf32>
      %cst_171 = arith.constant dense<0.000000e+00> : vector<4xf32>
      %194 = vector.multi_reduction <add>, %193, %cst_171 [1] : vector<4x256xf32> to vector<4xf32>
      %195 = vector.shape_cast %194 : vector<4xf32> to vector<4x1xf32>
      %c0_172 = arith.constant 0 : index
      %c0_173 = arith.constant 0 : index
      %c12_174 = arith.constant 12 : index
      %196 = vector.load %arg3[%c0_172, %c0_173, %c12_174] : memref<1x4x14xf32, #tpu.memory_space<vmem>>, vector<1x4x1xf32>
      %197 = vector.shape_cast %196 : vector<1x4x1xf32> to vector<4x1xf32>
      %198 = vector.shape_cast %195 : vector<4x1xf32> to vector<1x4x1xf32>
      tpu.vector_store %arg3[%c0_172, %c0_173, %c12_174], %198 {strides = array<i32>} : memref<1x4x14xf32, #tpu.memory_space<vmem>>, vector<1x4x1xf32>,
      %c13_175 = arith.constant 13 : index
      %c0_176 = arith.constant 0 : index
      %c0_177 = arith.constant 0 : index
      %199 = vector.load %arg4[%c13_175, %c0_176, %c0_177] : memref<14x4x256xf32, #tpu.memory_space<vmem>>, vector<1x4x256xf32>
      %200 = vector.shape_cast %199 : vector<1x4x256xf32> to vector<4x256xf32>
      %cst_178 = arith.constant dense<0.000000e+00> : vector<4xf32>
      %201 = vector.multi_reduction <add>, %200, %cst_178 [1] : vector<4x256xf32> to vector<4xf32>
      %202 = vector.shape_cast %201 : vector<4xf32> to vector<4x1xf32>
      %c0_179 = arith.constant 0 : index
      %c0_180 = arith.constant 0 : index
      %c13_181 = arith.constant 13 : index
      %203 = vector.load %arg3[%c0_179, %c0_180, %c13_181] : memref<1x4x14xf32, #tpu.memory_space<vmem>>, vector<1x4x1xf32>
      %204 = vector.shape_cast %203 : vector<1x4x1xf32> to vector<4x1xf32>
      %205 = vector.shape_cast %202 : vector<4x1xf32> to vector<1x4x1xf32>
      tpu.vector_store %arg3[%c0_179, %c0_180, %c13_181], %205 {strides = array<i32>} : memref<1x4x14xf32, #tpu.memory_space<vmem>>, vector<1x4x1xf32>,
    } else {
    }
    return
  }
  func.func @transform_0(%arg0: i32, %arg1: i32) -> (i32, i32, i32) {
    %c0_i32 = arith.constant 0 : i32
    %c0_i32_0 = arith.constant 0 : i32
    return %arg0, %c0_i32, %arg1 : i32, i32, i32
  }
  func.func @transform_1(%arg0: i32, %arg1: i32) -> (i32, i32, i32) {
    %c0_i32 = arith.constant 0 : i32
    %c0_i32_0 = arith.constant 0 : i32
    %c0_i32_1 = arith.constant 0 : i32
    return %arg0, %c0_i32, %c0_i32_0 : i32, i32, i32
  }
}

</mosaic_0001>

<llo_original>
// kernel: tpu_custom_call.1
$region0: #{tpu_custom_call.1}
  #allocation0 [shape = 'u32[]', space=smem, size = 0x4, offset = 0x4, fixed_abs, tag = 'smem constant byte address 0x4 - core index']
  #allocation1 [shape = 'u32[144,128]{1,0:T(1,128)}', space=vmem, size = 0x12000, scoped, tag = 'internal scratch']
  #allocation2 [shape = 'f32[14,4,256]{2,1,0:T(4,128)}', space=vmem, size = 0xe000, scoped, tag = 'scratch operand']
  %s0 = inlined_call_operand.hbm [shape: f32[2,16,256], index: 0, kind: input, shape index: {}]
  %s1 = inlined_call_operand.hbm [shape: f32[2,4,14], index: 1, kind: output, shape index: {}]
  %s2 = sld [smem:[#allocation0]]
  $region49: #{tpu_custom_call.1} parent=0
    _
  %s4 = ssub.s32 1, %s2
  %s5 = scalar_select 0, %s4, %s2
  $region1: #{tpu_custom_call.1} parent=0
    #allocation3 [shape = 'u8[32768]{0}', space=vmem, size = 0x8000, scoped, tag = 'input window, operand 0']
    #allocation4 [shape = 's32[2]{0}', space=sflag, size = 0x8, scoped, tag = 'scoped memory for tpu_custom_call.1']
    #allocation5 [shape = 's32[2]{0}', space=sflag, size = 0x8, scoped, tag = 'scoped memory for tpu_custom_call.1']
    #allocation6 [shape = 'u8[4096]{0}', space=vmem, size = 0x1000, scoped, tag = 'output window, operand 0']
    %6 = vsyncpa [#allocation4], 0
    %s7 = scalar_lea.sflag [#allocation4], 1
    %8 = vsyncpa %s7, 0
    %9 = vsyncpa [#allocation5], 0
    %s10 = scalar_lea.sflag [#allocation5], 1
    %11 = vsyncpa %s10, 0
    loop: start=0, step=1, limit=4
    $region2: #{tpu_custom_call.1} parent=1 // loop_pre_header
      _
    $region3: #{tpu_custom_call.1} parent=1 // loop_header
      %s13 = sphi 0, %s17
      %p14 = scmp.ge.s32.totalorder %s13, 4
      %s20 = sphi 0, %s32
      %s21 = sphi 0, %s28
      %s22 = sphi 0, %s20
      %s23 = sphi 0, %s21
      %s24 = sphi 0, %s22
      %s25 = sphi 0, %s23
      %s37 = sphi 0, %s39
      %s40 = sphi 0, %s37
      %s41 = sphi 0, %s40
      %s57 = sphi 0, %s41
      %s63 = sphi 0, %s65
      %s66 = sphi 0, %s63
      %s67 = sphi 0, %s66
      %s83 = sphi 0, %s67
    $region4: #{tpu_custom_call.1} parent=1 // loop_header_branch
      %16 = sbr.rel (%p14) target = $region8
    $region5: #{tpu_custom_call.1} parent=1 // loop_body
      %s18 = ssub.s32 %s13, 1
      %s19 = ssub.s32 %s13, 2
      %s26 = sadd.s32 1, %s21
      %p27 = scmp.ge.s32.totalorder %s26, 1
      %s28 = scalar_select %p27, 0, %s26
      %s29 = sadd.s32 1, %s20
      %s30 = scalar_select %p27, %s29, %s20
      %p31 = scmp.ge.s32.totalorder %s30, 2
      %s32 = scalar_select %p31, 0, %s30
      %s33 = ssub.s32 %s20, %s32
      %s34 = ssub.s32 %s21, %s28
      %s35 = sor.u32 %s33, %s34
      %p36 = scmp.eq.s32.totalorder %s35, 0
      %s38 = sadd.s32 %s37, 1
      %s39 = scalar_select %p36, %s37, %s38
      %p42 = pneg %p36
      %p43 = scmp.eq.s32.totalorder %s13, 1
      %p44 = por %p42, %p43
      %p45 = scmp.ne.s32.totalorder %s37, %s40
      %p46 = scmp.eq.s32.totalorder %s13, 0
      %p47 = por %p45, %p46
      %p48 = scmp.ne.s32.totalorder %s37, %s40
      %p49 = scmp.eq.s32.totalorder %s18, 1
      %p50 = por %p48, %p49
      %p51 = scmp.ne.s32.totalorder %s40, %s41
      %p52 = scmp.eq.s32.totalorder %s18, 0
      %p53 = por %p51, %p52
      %p54 = scmp.ne.s32.totalorder %s40, %s41
      %p55 = scmp.eq.s32.totalorder %s19, 1
      %p56 = por %p54, %p55
      %p58 = scmp.ne.s32.totalorder %s41, %s57
      %p59 = scmp.eq.s32.totalorder %s19, 0
      %p60 = por %p58, %p59
      %s61 = ssub.s32 %s20, %s32
      %p62 = scmp.eq.s32.totalorder %s61, 0
      %s64 = sadd.s32 %s63, 1
      %s65 = scalar_select %p62, %s63, %s64
      %p68 = pneg %p62
      %p69 = scmp.eq.s32.totalorder %s13, 1
      %p70 = por %p68, %p69
      %p71 = scmp.ne.s32.totalorder %s63, %s66
      %p72 = scmp.eq.s32.totalorder %s13, 0
      %p73 = por %p71, %p72
      %p74 = scmp.ne.s32.totalorder %s63, %s66
      %p75 = scmp.eq.s32.totalorder %s18, 1
      %p76 = por %p74, %p75
      %p77 = scmp.ne.s32.totalorder %s66, %s67
      %p78 = scmp.eq.s32.totalorder %s18, 0
      %p79 = por %p77, %p78
      %p80 = scmp.ne.s32.totalorder %s66, %s67
      %p81 = scmp.eq.s32.totalorder %s19, 1
      %p82 = por %p80, %p81
      %p84 = scmp.ne.s32.totalorder %s67, %s83
      %p85 = scmp.eq.s32.totalorder %s19, 0
      %p86 = por %p84, %p85
      %p87 = scmp.le.s32.totalorder 1, %s13
      %p88 = scmp.lt.s32.totalorder %s13, 3
      %p89 = pnand %p87, %p88
      %p90 = pneg %p89
      // Predicated region
      $region9: #{tpu_custom_call.1} parent=5 // pred_check
        _
      $region10: #{tpu_custom_call.1} parent=5 // pred_check_branch
        %92 = sbr.rel (%p89) target = $region12
      $region11: #{tpu_custom_call.1} parent=5 // pred_region
        %s93 = ssub.s32 %s13, 1
      $region12: #{tpu_custom_call.1} parent=5 // pred_fallthru
        _
      %p94 = scmp.lt.s32.totalorder %s13, 2
      // Predicated region
      $region13: #{tpu_custom_call.1} parent=5 // pred_check
        %p95 = pneg %p94
      $region14: #{tpu_custom_call.1} parent=5 // pred_check_branch
        %97 = sbr.rel (%p95) target = $region16
      $region15: #{tpu_custom_call.1} parent=5 // pred_region
        // Predicated region
        $region17: #{tpu_custom_call.1} parent=15 // pred_check
          %p98 = pneg %p47
        $region18: #{tpu_custom_call.1} parent=15 // pred_check_branch
          %100 = sbr.rel (%p98) target = $region20
        $region19: #{tpu_custom_call.1} parent=15 // pred_region
          %s101 = sand.u32 %s37, 1
          %s102 = scalar_lea.sflag [#allocation4], %s101
          %s103 = sand.u32 %s37, 1
          %s104 = smul.addr %s103, 32
          %s105 = scalar_lea.vmem [#allocation3], %s104
          %s106 = smul.u32 2, %s21
          %s108 = ssub.s32 512, 512
          %109 = vsyncadd %s102, %s108
          %s110 = smul.addr %s20, 4
          %s111 = sadd.s32 %s106, %s110
          %s112 = smul.addr %s111, 128
          %s113 = scalar_lea.hbm %s0, %s112
          %s114 = sshll.u32 %s105, 4
          %s115 = int_to_ptr.vmem [resolvable:$true] %s114
          %120 = dma.hbm_to_vmem [thread:$0]  %s113, 512, %s115, %s102, 256, 256, 16
        $region20: #{tpu_custom_call.1} parent=15 // pred_fallthru
          _
      $region16: #{tpu_custom_call.1} parent=5 // pred_fallthru
        _
      %p121 = scmp.le.s32.totalorder 1, %s13
      %p122 = scmp.lt.s32.totalorder %s13, 3
      %p123 = pnand %p121, %p122
      %p124 = pneg %p123
      // Predicated region
      $region21: #{tpu_custom_call.1} parent=5 // pred_check
        _
      $region22: #{tpu_custom_call.1} parent=5 // pred_check_branch
        %126 = sbr.rel (%p123) target = $region24
      $region23: #{tpu_custom_call.1} parent=5 // pred_region
        %s127 = ssub.s32 %s13, 1
        %s128 = sand.u32 %s40, 1
        %s129 = scalar_lea.sflag [#allocation4], %s128
        %s130 = sand.u32 %s40, 1
        %s131 = smul.addr %s130, 32
        %s132 = scalar_lea.vmem [#allocation3], %s131
        // Predicated region
        $region25: #{tpu_custom_call.1} parent=23 // pred_check
          %p133 = pneg %p53
        $region26: #{tpu_custom_call.1} parent=23 // pred_check_branch
          %135 = sbr.rel (%p133) target = $region28
        $region27: #{tpu_custom_call.1} parent=23 // pred_region
          %136 = dma.done %s129, 512
        $region28: #{tpu_custom_call.1} parent=23 // pred_fallthru
          _
        %s137 = sand.u32 %s40, 1
        %s138 = scalar_lea.sflag [#allocation4], %s137
        %s139 = sand.u32 %s40, 1
        %s140 = smul.addr %s139, 32
        %s141 = scalar_lea.vmem [#allocation3], %s140
        %p142 = pneg %p53
        %p143 = pneg %p50
        %p144 = pneg %p79
        %p145 = pneg %p76
        %s146 = sand.u32 %s66, 1
        %s147 = scalar_lea.sflag [#allocation5], %s146
        %s148 = sand.u32 %s66, 1
        %s149 = smul.addr %s148, 4
        %s150 = scalar_lea.vmem [#allocation6], %s149
        %s151 = smul.u32 2, %s23
        %p152 = scmp.eq.s32.totalorder %s23, 0
        // Predicated region
        $region29: #{tpu_custom_call.1} parent=23 // pred_check
          %p153 = pneg %p152
        $region30: #{tpu_custom_call.1} parent=23 // pred_check_branch
          %155 = sbr.rel (%p153) target = $region32
        $region31: #{tpu_custom_call.1} parent=23 // pred_region
          %156 = vst [vmem:[#allocation2] sm:$0xff] 0.0
          %157 = vst [vmem:[#allocation2 + $0x8] sm:$0xff] 0.0
          %158 = vst [vmem:[#allocation2 + $0x10] sm:$0xff] 0.0
          %159 = vst [vmem:[#allocation2 + $0x18] sm:$0xff] 0.0
          %160 = vst [vmem:[#allocation2 + $0x20] sm:$0xff] 0.0
          %161 = vst [vmem:[#allocation2 + $0x28] sm:$0xff] 0.0
          %162 = vst [vmem:[#allocation2 + $0x30] sm:$0xff] 0.0
          %163 = vst [vmem:[#allocation2 + $0x38] sm:$0xff] 0.0
          %164 = vst [vmem:[#allocation2 + $0x40] sm:$0xff] 0.0
          %165 = vst [vmem:[#allocation2 + $0x48] sm:$0xff] 0.0
          %166 = vst [vmem:[#allocation2 + $0x50] sm:$0xff] 0.0
          %167 = vst [vmem:[#allocation2 + $0x58] sm:$0xff] 0.0
          %168 = vst [vmem:[#allocation2 + $0x60] sm:$0xff] 0.0
          %169 = vst [vmem:[#allocation2 + $0x68] sm:$0xff] 0.0
        $region32: #{tpu_custom_call.1} parent=23 // pred_fallthru
          _
        %v170 = vld [vmem:[%s132] sm:$0xf]
        %v171 = vld [vmem:[%s132 + $0x8] sm:$0xf]
        %v172 = vld [vmem:[%s132] sm:$0xf0]
        %v173 = vld [vmem:[%s132 + $0x8] sm:$0xf0]
        %v174 = vld [vmem:[%s132 + $0x10] sm:$0xf]
        %v175 = vld [vmem:[%s132 + $0x18] sm:$0xf]
        %v176 = vld [vmem:[%s132 + $0x10] sm:$0xf0]
        %v177 = vld [vmem:[%s132 + $0x18] sm:$0xf0]
        %v178 = vld [vmem:[#allocation2] sm:$0xff]
        %v181 = vcombine.low %v170, %v171
        %v183 = vadd.f32 %v178, %v181
        %184 = vst [vmem:[#allocation2] sm:$0xff] %v183
        %s185 = scalar_lea.vmem [#allocation2], 8
        %v186 = vld [vmem:[%s185] sm:$0xff]
        %v189 = vcombine.high %v172, %v173
        %v191 = vadd.f32 %v186, %v189
        %192 = vst [vmem:[%s185] sm:$0xff] %v191
        %s193 = scalar_lea.vmem [#allocation2], 16
        %v194 = vld [vmem:[%s193] sm:$0xff]
        %v197 = vcombine.low %v174, %v175
        %v199 = vadd.f32 %v194, %v197
        %200 = vst [vmem:[%s193] sm:$0xff] %v199
        %s201 = scalar_lea.vmem [#allocation2], 24
        %v202 = vld [vmem:[%s201] sm:$0xff]
        %v205 = vcombine.high %v176, %v177
        %v207 = vadd.f32 %v202, %v205
        %208 = vst [vmem:[%s201] sm:$0xff] %v207
        %s209 = scalar_lea.vmem [#allocation2], 32
        %v210 = vld [vmem:[%s209] sm:$0xff]
        %v211 = vmul.f32 %v170, %v170
        %v212 = vmul.f32 %v171, %v171
        %v215 = vcombine.low %v211, %v212
        %v217 = vadd.f32 %v210, %v215
        %218 = vst [vmem:[%s209] sm:$0xff] %v217
        %s219 = scalar_lea.vmem [#allocation2], 40
        %v220 = vld [vmem:[%s219] sm:$0xff]
        %v221 = vmul.f32 %v172, %v172
        %v222 = vmul.f32 %v173, %v173
        %v225 = vcombine.high %v221, %v222
        %v227 = vadd.f32 %v220, %v225
        %228 = vst [vmem:[%s219] sm:$0xff] %v227
        %s229 = scalar_lea.vmem [#allocation2], 48
        %v230 = vld [vmem:[%s229] sm:$0xff]
        %v231 = vmul.f32 %v174, %v174
        %v232 = vmul.f32 %v175, %v175
        %v235 = vcombine.low %v231, %v232
        %v237 = vadd.f32 %v230, %v235
        %238 = vst [vmem:[%s229] sm:$0xff] %v237
        %s239 = scalar_lea.vmem [#allocation2], 56
        %v240 = vld [vmem:[%s239] sm:$0xff]
        %v241 = vmul.f32 %v176, %v176
        %v242 = vmul.f32 %v177, %v177
        %v245 = vcombine.high %v241, %v242
        %v247 = vadd.f32 %v240, %v245
        %248 = vst [vmem:[%s239] sm:$0xff] %v247
        %s249 = scalar_lea.vmem [#allocation2], 64
        %v250 = vld [vmem:[%s249] sm:$0xff]
        %v251 = vrot.slane %v172, 4
        %v252 = vrot.slane %v173, 4
        %v255 = vmul.f32 %v170, %v251
        %v256 = vmul.f32 %v171, %v252
        %v259 = vcombine.low %v255, %v256
        %v261 = vadd.f32 %v250, %v259
        %262 = vst [vmem:[%s249] sm:$0xff] %v261
        %s263 = scalar_lea.vmem [#allocation2], 72
        %v264 = vld [vmem:[%s263] sm:$0xff]
        %v265 = vmul.f32 %v170, %v174
        %v266 = vmul.f32 %v171, %v175
        %v269 = vcombine.low %v265, %v266
        %v271 = vadd.f32 %v264, %v269
        %272 = vst [vmem:[%s263] sm:$0xff] %v271
        %s273 = scalar_lea.vmem [#allocation2], 80
        %v274 = vld [vmem:[%s273] sm:$0xff]
        %v275 = vrot.slane %v176, 4
        %v276 = vrot.slane %v177, 4
        %v279 = vmul.f32 %v170, %v275
        %v280 = vmul.f32 %v171, %v276
        %v283 = vcombine.low %v279, %v280
        %v285 = vadd.f32 %v274, %v283
        %286 = vst [vmem:[%s273] sm:$0xff] %v285
        %s287 = scalar_lea.vmem [#allocation2], 88
        %v288 = vld [vmem:[%s287] sm:$0xff]
        %v289 = vrot.slane %v174, 4
        %v290 = vrot.slane %v175, 4
        %v293 = vmul.f32 %v172, %v289
        %v294 = vmul.f32 %v173, %v290
        %v297 = vcombine.high %v293, %v294
        %v299 = vadd.f32 %v288, %v297
        %300 = vst [vmem:[%s287] sm:$0xff] %v299
        %s301 = scalar_lea.vmem [#allocation2], 96
        %v302 = vld [vmem:[%s301] sm:$0xff]
        %v303 = vmul.f32 %v172, %v176
        %v304 = vmul.f32 %v173, %v177
        %v307 = vcombine.high %v303, %v304
        %v309 = vadd.f32 %v302, %v307
        %310 = vst [vmem:[%s301] sm:$0xff] %v309
        %s311 = scalar_lea.vmem [#allocation2], 104
        %v312 = vld [vmem:[%s311] sm:$0xff]
        %v313 = vmul.f32 %v174, %v275
        %v314 = vmul.f32 %v175, %v276
        %v317 = vcombine.low %v313, %v314
        %v319 = vadd.f32 %v312, %v317
        %320 = vst [vmem:[%s311] sm:$0xff] %v319
        // Predicated region
        $region33: #{tpu_custom_call.1} parent=23 // pred_check
          %p321 = pneg %p152
        $region34: #{tpu_custom_call.1} parent=23 // pred_check_branch
          %323 = sbr.rel (%p321) target = $region36
        $region35: #{tpu_custom_call.1} parent=23 // pred_region
          %v324 = vld [vmem:[#allocation2] sm:$0xff]
          %v326 = vcombine.high %v324, %v324
          %vm328 = vcmask 1043456
          %v329 = vsel %vm328, %v324, 0.0
          %v330 = vsel %vm328, %v326, 0.0
          %v331 = vadd.f32 %v329, %v330
          %332 = vadd.xlane.f32.xlu0 %v331
          %v333 = vpop.xlane.xlu0 %332
          %vm334 = vcmask 3072
          %335 = vst.msk [vmem:[%s150] sm:$0xf] %vm334, %v333
          %v336 = vld [vmem:[%s185] sm:$0xff]
          %v338 = vcombine.high %v336, %v336
          %v340 = vsel %vm328, %v336, 0.0
          %v341 = vsel %vm328, %v338, 0.0
          %v342 = vadd.f32 %v340, %v341
          %343 = vadd.xlane.f32.xlu0 %v342
          %v344 = vpop.xlane.xlu0 %343
          %vm345 = vcmask 11272
          %346 = vst.msk [vmem:[%s150] sm:$0xf] %vm345, %v344
          %v347 = vld [vmem:[%s193] sm:$0xff]
          %v349 = vcombine.high %v347, %v347
          %v351 = vsel %vm328, %v347, 0.0
          %v352 = vsel %vm328, %v349, 0.0
          %v353 = vadd.f32 %v351, %v352
          %354 = vadd.xlane.f32.xlu0 %v353
          %v355 = vpop.xlane.xlu0 %354
          %vm356 = vcmask 19472
          %357 = vst.msk [vmem:[%s150] sm:$0xf] %vm356, %v355
          %v358 = vld [vmem:[%s201] sm:$0xff]
          %v360 = vcombine.high %v358, %v358
          %v362 = vsel %vm328, %v358, 0.0
          %v363 = vsel %vm328, %v360, 0.0
          %v364 = vadd.f32 %v362, %v363
          %365 = vadd.xlane.f32.xlu0 %v364
          %v366 = vpop.xlane.xlu0 %365
          %vm367 = vcmask 27672
          %368 = vst.msk [vmem:[%s150] sm:$0xf] %vm367, %v366
          %v369 = vld [vmem:[%s209] sm:$0xff]
          %v371 = vcombine.high %v369, %v369
          %v373 = vsel %vm328, %v369, 0.0
          %v374 = vsel %vm328, %v371, 0.0
          %v375 = vadd.f32 %v373, %v374
          %376 = vadd.xlane.f32.xlu0 %v375
          %v377 = vpop.xlane.xlu0 %376
          %vm378 = vcmask 35872
          %379 = vst.msk [vmem:[%s150] sm:$0xf] %vm378, %v377
          %v380 = vld [vmem:[%s219] sm:$0xff]
          %v382 = vcombine.high %v380, %v380
          %v384 = vsel %vm328, %v380, 0.0
          %v385 = vsel %vm328, %v382, 0.0
          %v386 = vadd.f32 %v384, %v385
          %387 = vadd.xlane.f32.xlu0 %v386
          %v388 = vpop.xlane.xlu0 %387
          %vm389 = vcmask 44072
          %390 = vst.msk [vmem:[%s150] sm:$0xf] %vm389, %v388
          %v391 = vld [vmem:[%s229] sm:$0xff]
          %v393 = vcombine.high %v391, %v391
          %v395 = vsel %vm328, %v391, 0.0
          %v396 = vsel %vm328, %v393, 0.0
          %v397 = vadd.f32 %v395, %v396
          %398 = vadd.xlane.f32.xlu0 %v397
          %v399 = vpop.xlane.xlu0 %398
          %vm400 = vcmask 52272
          %401 = vst.msk [vmem:[%s150] sm:$0xf] %vm400, %v399
          %v402 = vld [vmem:[%s239] sm:$0xff]
          %v404 = vcombine.high %v402, %v402
          %v406 = vsel %vm328, %v402, 0.0
          %v407 = vsel %vm328, %v404, 0.0
          %v408 = vadd.f32 %v406, %v407
          %409 = vadd.xlane.f32.xlu0 %v408
          %v410 = vpop.xlane.xlu0 %409
          %vm411 = vcmask 60472
          %412 = vst.msk [vmem:[%s150] sm:$0xf] %vm411, %v410
          %v413 = vld [vmem:[%s249] sm:$0xff]
          %v415 = vcombine.high %v413, %v413
          %v417 = vsel %vm328, %v413, 0.0
          %v418 = vsel %vm328, %v415, 0.0
          %v419 = vadd.f32 %v417, %v418
          %420 = vadd.xlane.f32.xlu0 %v419
          %v421 = vpop.xlane.xlu0 %420
          %vm422 = vcmask 68672
          %423 = vst.msk [vmem:[%s150] sm:$0xf] %vm422, %v421
          %v424 = vld [vmem:[%s263] sm:$0xff]
          %v426 = vcombine.high %v424, %v424
          %v428 = vsel %vm328, %v424, 0.0
          %v429 = vsel %vm328, %v426, 0.0
          %v430 = vadd.f32 %v428, %v429
          %431 = vadd.xlane.f32.xlu0 %v430
          %v432 = vpop.xlane.xlu0 %431
          %vm433 = vcmask 76872
          %434 = vst.msk [vmem:[%s150] sm:$0xf] %vm433, %v432
          %v435 = vld [vmem:[%s273] sm:$0xff]
          %v437 = vcombine.high %v435, %v435
          %v439 = vsel %vm328, %v435, 0.0
          %v440 = vsel %vm328, %v437, 0.0
          %v441 = vadd.f32 %v439, %v440
          %442 = vadd.xlane.f32.xlu0 %v441
          %v443 = vpop.xlane.xlu0 %442
          %vm444 = vcmask 85072
          %445 = vst.msk [vmem:[%s150] sm:$0xf] %vm444, %v443
          %v446 = vld [vmem:[%s287] sm:$0xff]
          %v448 = vcombine.high %v446, %v446
          %v450 = vsel %vm328, %v446, 0.0
          %v451 = vsel %vm328, %v448, 0.0
          %v452 = vadd.f32 %v450, %v451
          %453 = vadd.xlane.f32.xlu0 %v452
          %v454 = vpop.xlane.xlu0 %453
          %vm455 = vcmask 93272
          %456 = vst.msk [vmem:[%s150] sm:$0xf] %vm455, %v454
          %v457 = vld [vmem:[%s301] sm:$0xff]
          %v459 = vcombine.high %v457, %v457
          %v461 = vsel %vm328, %v457, 0.0
          %v462 = vsel %vm328, %v459, 0.0
          %v463 = vadd.f32 %v461, %v462
          %464 = vadd.xlane.f32.xlu0 %v463
          %v465 = vpop.xlane.xlu0 %464
          %vm466 = vcmask 101472
          %467 = vst.msk [vmem:[%s150] sm:$0xf] %vm466, %v465
          %v468 = vld [vmem:[%s311] sm:$0xff]
          %v470 = vcombine.high %v468, %v468
          %v472 = vsel %vm328, %v468, 0.0
          %v473 = vsel %vm328, %v470, 0.0
          %v474 = vadd.f32 %v472, %v473
          %475 = vadd.xlane.f32.xlu0 %v474
          %v476 = vpop.xlane.xlu0 %475
          %vm477 = vcmask 109672
          %478 = vst.msk [vmem:[%s150] sm:$0xf] %vm477, %v476
        $region36: #{tpu_custom_call.1} parent=23 // pred_fallthru
          _
        %s479 = sand.u32 %s66, 1
        %s480 = scalar_lea.sflag [#allocation5], %s479
        %s481 = sand.u32 %s66, 1
        %s482 = smul.addr %s481, 4
        %s483 = scalar_lea.vmem [#allocation6], %s482
        // Predicated region
        $region37: #{tpu_custom_call.1} parent=23 // pred_check
          %p484 = pneg %p76
        $region38: #{tpu_custom_call.1} parent=23 // pred_check_branch
          %486 = sbr.rel (%p484) target = $region40
        $region39: #{tpu_custom_call.1} parent=23 // pred_region
          %s488 = ssub.s32 64, 64
          %489 = vsyncadd %s480, %s488
          %s490 = smul.addr %s22, 64
          %s491 = scalar_lea.hbm %s1, %s490
          %s493 = sshll.u32 %s483, 4
          %s494 = int_to_ptr.vmem [resolvable:$true] %s493
          %496 = dma.vmem_to_hbm [thread:$0]  %s494, 64, %s491, %s480
        $region40: #{tpu_custom_call.1} parent=23 // pred_fallthru
          _
      $region24: #{tpu_custom_call.1} parent=5 // pred_fallthru
        _
      %p497 = scmp.le.s32.totalorder 2, %s13
      // Predicated region
      $region41: #{tpu_custom_call.1} parent=5 // pred_check
        %p498 = pneg %p497
      $region42: #{tpu_custom_call.1} parent=5 // pred_check_branch
        %500 = sbr.rel (%p498) target = $region44
      $region43: #{tpu_custom_call.1} parent=5 // pred_region
        %s501 = ssub.s32 %s13, 2
        // Predicated region
        $region45: #{tpu_custom_call.1} parent=43 // pred_check
          %p502 = pneg %p82
        $region46: #{tpu_custom_call.1} parent=43 // pred_check_branch
          %504 = sbr.rel (%p502) target = $region48
        $region47: #{tpu_custom_call.1} parent=43 // pred_region
          %s505 = sand.u32 %s67, 1
          %s506 = scalar_lea.sflag [#allocation5], %s505
          %s507 = sand.u32 %s67, 1
          %s508 = smul.addr %s507, 4
          %s509 = scalar_lea.vmem [#allocation6], %s508
          %510 = dma.done %s506, 64
        $region48: #{tpu_custom_call.1} parent=43 // pred_fallthru
          _
      $region44: #{tpu_custom_call.1} parent=5 // pred_fallthru
        _
    $region6: #{tpu_custom_call.1} parent=1 // loop_footer
      %s17 = sadd.s32 1, %s13
    $region7: #{tpu_custom_call.1} parent=1 // loop_footer_branch
      %12 = sbr.rel target = $region3
    $region8: #{tpu_custom_call.1} parent=1 // loop_exit
      _
    %511 = vsyncpa [#allocation4], 1
    %s512 = scalar_lea.sflag [#allocation4], 1
    %513 = vsyncpa %s512, 1
    %514 = vsyncpa [#allocation5], 1
    %s515 = scalar_lea.sflag [#allocation5], 1
    %516 = vsyncpa %s515, 1

</llo_original>
